<compile_context>
chip_gen: v7x
topology: tpu7x:2x2x1
jax: 0.10.0
libtpu: 0.0.40
codegen_flags: <defaults>
</compile_context>

<pallas_src>
import functools

import jax
import jax.numpy as jnp
from jax.experimental import pallas as pl
from jax.experimental.pallas import tpu as pltpu


# ----------------------------------------------------------------------------
# Fused Pallas kernel:  h <- relu(h_bf16 @ W_l_bf16 + b_l)  for l = 0..L-1,
# all layers in one kernel body; activations stay in vregs between layers.
# Outputs: per-layer (or final-only) activations in VMEM + one SMEM vector of
# per-layer means.
# ----------------------------------------------------------------------------
def _make_fused_chain_kernel(num_layers, emit_all):
    n_in = 1 + 2 * num_layers
    n_y = num_layers if emit_all else 1

    def kernel(*refs):
        in_refs = refs[:n_in]
        y_refs = refs[n_in:n_in + n_y]        # VMEM activation outputs
        m_ref = refs[n_in + n_y]              # SMEM (num_layers,) means

        h = in_refs[0][...]                   # f32 activations
        for l in range(num_layers):
            w = in_refs[1 + 2 * l][...]       # bf16 weights (MXU-native)
            b = in_refs[2 + 2 * l][...]       # f32 bias (1, H)
            acc = jnp.dot(h.astype(w.dtype), w,
                          preferred_element_type=jnp.float32)
            y = jnp.maximum(acc + b, 0.0)     # bias/ReLU in f32 (v5e-safe)
            # Per-layer mean -> scalar -> SMEM (no masked VMEM partial store).
            inv_count = 1.0 / float(y.shape[0] * y.shape[1])
            m_ref[l] = jnp.sum(y) * inv_count
            if emit_all or l == num_layers - 1:
                idx = l if emit_all else 0
                y_refs[idx][...] = y.astype(y_refs[idx].dtype)
            h = y                             # stays resident for next layer

    return kernel


@functools.partial(jax.jit, static_argnames=("emit_all",))
def fused_linear_relu_chain(x, params, emit_all=True):
    """Run the whole wrapper chain in a single jitted pallas_call.

    x:      (B, D) f32 activations
    params: tuple of (w, b); w: (D_l, H_l) bf16, b: (1, H_l) f32
    returns ([y_0..y_{L-1}] or [y_last], means)  with means: (L,) f32
    """
    num_layers = len(params)
    B = x.shape[0]

    flat_inputs = [x]
    y_shapes = []
    resident_bytes = x.size * x.dtype.itemsize
    for l, (w, b) in enumerate(params):
        flat_inputs += [w, b]
        resident_bytes += w.size * w.dtype.itemsize + b.size * b.dtype.itemsize
        if emit_all or l == num_layers - 1:
            y_shapes.append(jax.ShapeDtypeStruct((B, w.shape[1]), x.dtype))
            resident_bytes += B * w.shape[1] * x.dtype.itemsize

    # Whole-array VMEM residency must fit the default scoped limit comfortably.
    # TODO(synk): when this trips, switch to the layer-grid pipelined design.
    assert resident_bytes < 24 * 1024 * 1024, (
        "layer chain too large for whole-array VMEM residency; tile it")

    vmem = pltpu.MemorySpace.VMEM
    smem = pltpu.MemorySpace.SMEM
    out_shape = tuple(y_shapes) + (jax.ShapeDtypeStruct((num_layers,),
                                                        jnp.float32),)
    out_specs = (tuple(pl.BlockSpec(memory_space=vmem) for _ in y_shapes)
                 + (pl.BlockSpec(memory_space=smem),))

    outs = pl.pallas_call(
        _make_fused_chain_kernel(num_layers, emit_all),
        out_shape=out_shape,
        # Whole-array VMEM residency: no grid, no index_map, no double-buffer.
        in_specs=[pl.BlockSpec(memory_space=vmem) for _ in flat_inputs],
        out_specs=out_specs,
    )(*flat_inputs)

    ys = list(outs[:-1])
    means = outs[-1]
    return ys, means


# ----------------------------------------------------------------------------
# Synthetic model wrapper: mirrors the (engine, batch, endpoint, bundle)
# calling convention expected by ModelContainer.
# ----------------------------------------------------------------------------
class LinearReluWrapper:
    def __init__(self, key, in_features, out_features, name):
        kw, kb = jax.random.split(key)
        # bf16 weights: native MXU dtype on v6e/v7x, half the weight DMA bytes.
        self.w = (jax.random.normal(kw, (in_features, out_features),
                                    jnp.float32)
                  * (1.0 / jnp.sqrt(in_features))).astype(jnp.bfloat16)
        self.b = jax.random.normal(kb, (1, out_features), jnp.float32) * 0.01
        self.name = name

    def __call__(self, engine, batch, endpoint, bundle):
        # Standalone (unfused) path: single-layer instance of the same kernel.
        x = endpoint.get("feat", batch["x"])
        (y,), means = fused_linear_relu_chain(x, ((self.w, self.b),))
        endpoint = dict(endpoint)
        bundle = dict(bundle)
        endpoint["feat"] = y
        endpoint[self.name] = y
        bundle[self.name + "_mean"] = means[0]
        return endpoint, bundle


# ----------------------------------------------------------------------------
# ModelContainer: faithful translation of the PyTorch forward semantics.
# When every wrapper is a fusable LinearReluWrapper, the whole chain runs as
# ONE jitted Pallas kernel; endpoint/bundle contents match the sequential
# wrapper-by-wrapper loop.
# ----------------------------------------------------------------------------
class ModelContainer:
    def __init__(self, device, model_wrappers):
        self.device = device
        self.container = list(model_wrappers)

    def forward(self, engine, batch):
        bundle = {}
        endpoint = {}

        if self.container and all(isinstance(m, LinearReluWrapper)
                                  for m in self.container):
            # Fused fast path: single jitted kernel for the entire chain.
            params = tuple((m.w, m.b) for m in self.container)
            ys, means = fused_linear_relu_chain(batch["x"], params)
            for i, (m_w, y) in enumerate(zip(self.container, ys)):
                endpoint["feat"] = y
                endpoint[m_w.name] = y
                bundle[m_w.name + "_mean"] = means[i]
            return endpoint

        # Generic path: identical chaining semantics to the PyTorch module.
        for m_w in self.container:
            endpoint, bundle = m_w(engine, batch, endpoint, bundle)
        return endpoint

    __call__ = forward

    def attach(self, engine, bundle):
        pass


# ----------------------------------------------------------------------------
if __name__ == "__main__":
    key = jax.random.PRNGKey(0)
    k_x, k0, k1, k2 = jax.random.split(key, 4)

    # B=16 fills the bf16 (16,128) sublane tile; H=128 is lane-native.
    # TODO(synk): real workloads should use B >= 128/256 for MXU utilization.
    B, H = 16, 128
    x = jax.random.normal(k_x, (B, H), jnp.float32)
    batch = {"x": x}

    wrappers = [
        LinearReluWrapper(k0, H, H, "m0"),
        LinearReluWrapper(k1, H, H, "m1"),
        LinearReluWrapper(k2, H, H, "m2"),
    ]
    container = ModelContainer(device=None, model_wrappers=wrappers)

    endpoint = container.forward(engine=None, batch=batch)
    out = jax.block_until_ready(endpoint["feat"])

    # Pure-JAX reference of the same chain (same bf16 dot operands,
    # f32 accumulation / bias / ReLU / mean).
    ref = x
    ref_layers, ref_means = [], []
    for w in wrappers:
        acc = jnp.dot(ref.astype(jnp.bfloat16), w.w,
                      preferred_element_type=jnp.float32)
        ref = jnp.maximum(acc + w.b, 0.0)
        ref_layers.append(ref)
        ref_means.append(jnp.mean(ref))

    assert out.shape == (B, H)
    assert jnp.allclose(out, ref_layers[-1], atol=2e-3, rtol=2e-3)

    # Per-layer endpoint entries and in-kernel means vs. the reference.
    _, means = fused_linear_relu_chain(x, tuple((w.w, w.b) for w in wrappers))
    for i, name in enumerate(("m0", "m1", "m2")):
        assert jnp.allclose(endpoint[name], ref_layers[i], atol=2e-3, rtol=2e-3)
        assert jnp.allclose(means[i], ref_means[i], atol=1e-3, rtol=1e-3)

    print("KERNEL_OK")
</pallas_src>

<mosaic_0001>
module attributes {stable_mosaic.version = 11 : i64} {
  func.func @kernel(%arg0: memref<16x128xf32, #tpu.memory_space<vmem>>, %arg1: memref<128x128xbf16, #tpu.memory_space<vmem>>, %arg2: memref<1x128xf32, #tpu.memory_space<vmem>>, %arg3: memref<128x128xbf16, #tpu.memory_space<vmem>>, %arg4: memref<1x128xf32, #tpu.memory_space<vmem>>, %arg5: memref<128x128xbf16, #tpu.memory_space<vmem>>, %arg6: memref<1x128xf32, #tpu.memory_space<vmem>>, %arg7: memref<16x128xf32, #tpu.memory_space<vmem>>, %arg8: memref<16x128xf32, #tpu.memory_space<vmem>>, %arg9: memref<16x128xf32, #tpu.memory_space<vmem>>, %arg10: memref<3xf32, #tpu.memory_space<smem>>) attributes {dimension_semantics = [], scalar_prefetch = 0 : i64, scratch_operands = 0 : i64, tpu.core_type = #tpu.core_type<tc>} {
    %c0 = arith.constant 0 : index
    %c0_0 = arith.constant 0 : index
    %0 = vector.load %arg0[%c0, %c0_0] : memref<16x128xf32, #tpu.memory_space<vmem>>, vector<16x128xf32>
    %c0_1 = arith.constant 0 : index
    %c0_2 = arith.constant 0 : index
    %1 = vector.load %arg1[%c0_1, %c0_2] : memref<128x128xbf16, #tpu.memory_space<vmem>>, vector<128x128xbf16>
    %c0_3 = arith.constant 0 : index
    %c0_4 = arith.constant 0 : index
    %2 = vector.load %arg2[%c0_3, %c0_4] : memref<1x128xf32, #tpu.memory_space<vmem>>, vector<1x128xf32>
    %3 = arith.truncf %0 : vector<16x128xf32> to vector<16x128xbf16>
    %cst = arith.constant dense<0.000000e+00> : vector<16x128xf32>
    %4 = tpu.matmul %3, %1, %cst {dimension_numbers = #tpu.dot_dimension_numbers<[1], [0], [0], [1], [0, 0, 1, 1], [], []>} : vector<16x128xbf16>, vector<128x128xbf16>, vector<16x128xf32> -> vector<16x128xf32>
    %5 = vector.broadcast %2 : vector<1x128xf32> to vector<16x128xf32>
    %6 = arith.addf %4, %5 : vector<16x128xf32>
    %cst_5 = arith.constant 0.000000e+00 : f32
    %7 = vector.broadcast %cst_5 : f32 to vector<16x128xf32>
    %8 = arith.maximumf %6, %7 : vector<16x128xf32>
    %9 = vector.shape_cast %8 : vector<16x128xf32> to vector<1x16x128xf32>
    %cst_6 = arith.constant dense<0.000000e+00> : vector<1xf32>
    %10 = vector.multi_reduction <add>, %9, %cst_6 [1, 2] : vector<1x16x128xf32> to vector<1xf32>
    %11 = vector.shape_cast %10 : vector<1xf32> to vector<1x1x1xf32>
    %12 = vector.extract %11[0, 0, 0] : f32 from vector<1x1x1xf32>
    %cst_7 = arith.constant 4.8828125E-4 : f32
    %13 = arith.mulf %12, %cst_7 : f32
    %c0_8 = arith.constant 0 : index
    %14 = memref.load %arg10[%c0_8] : memref<3xf32, #tpu.memory_space<smem>>
    memref.store %13, %arg10[%c0_8] : memref<3xf32, #tpu.memory_space<smem>>
    %c0_9 = arith.constant 0 : index
    %c0_10 = arith.constant 0 : index
    %15 = vector.load %arg7[%c0_9, %c0_10] : memref<16x128xf32, #tpu.memory_space<vmem>>, vector<16x128xf32>
    tpu.vector_store %arg7[%c0_9, %c0_10], %8 {strides = array<i32>} : memref<16x128xf32, #tpu.memory_space<vmem>>, vector<16x128xf32>,
    %c0_11 = arith.constant 0 : index
    %c0_12 = arith.constant 0 : index
    %16 = vector.load %arg3[%c0_11, %c0_12] : memref<128x128xbf16, #tpu.memory_space<vmem>>, vector<128x128xbf16>
    %c0_13 = arith.constant 0 : index
    %c0_14 = arith.constant 0 : index
    %17 = vector.load %arg4[%c0_13, %c0_14] : memref<1x128xf32, #tpu.memory_space<vmem>>, vector<1x128xf32>
    %18 = arith.truncf %8 : vector<16x128xf32> to vector<16x128xbf16>
    %cst_15 = arith.constant dense<0.000000e+00> : vector<16x128xf32>
    %19 = tpu.matmul %18, %16, %cst_15 {dimension_numbers = #tpu.dot_dimension_numbers<[1], [0], [0], [1], [0, 0, 1, 1], [], []>} : vector<16x128xbf16>, vector<128x128xbf16>, vector<16x128xf32> -> vector<16x128xf32>
    %20 = vector.broadcast %17 : vector<1x128xf32> to vector<16x128xf32>
    %21 = arith.addf %19, %20 : vector<16x128xf32>
    %cst_16 = arith.constant 0.000000e+00 : f32
    %22 = vector.broadcast %cst_16 : f32 to vector<16x128xf32>
    %23 = arith.maximumf %21, %22 : vector<16x128xf32>
    %24 = vector.shape_cast %23 : vector<16x128xf32> to vector<1x16x128xf32>
    %cst_17 = arith.constant dense<0.000000e+00> : vector<1xf32>
    %25 = vector.multi_reduction <add>, %24, %cst_17 [1, 2] : vector<1x16x128xf32> to vector<1xf32>
    %26 = vector.shape_cast %25 : vector<1xf32> to vector<1x1x1xf32>
    %27 = vector.extract %26[0, 0, 0] : f32 from vector<1x1x1xf32>
    %cst_18 = arith.constant 4.8828125E-4 : f32
    %28 = arith.mulf %27, %cst_18 : f32
    %c1 = arith.constant 1 : index
    %29 = memref.load %arg10[%c1] : memref<3xf32, #tpu.memory_space<smem>>
    memref.store %28, %arg10[%c1] : memref<3xf32, #tpu.memory_space<smem>>
    %c0_19 = arith.constant 0 : index
    %c0_20 = arith.constant 0 : index
    %30 = vector.load %arg8[%c0_19, %c0_20] : memref<16x128xf32, #tpu.memory_space<vmem>>, vector<16x128xf32>
    tpu.vector_store %arg8[%c0_19, %c0_20], %23 {strides = array<i32>} : memref<16x128xf32, #tpu.memory_space<vmem>>, vector<16x128xf32>,
    %c0_21 = arith.constant 0 : index
    %c0_22 = arith.constant 0 : index
    %31 = vector.load %arg5[%c0_21, %c0_22] : memref<128x128xbf16, #tpu.memory_space<vmem>>, vector<128x128xbf16>
    %c0_23 = arith.constant 0 : index
    %c0_24 = arith.constant 0 : index
    %32 = vector.load %arg6[%c0_23, %c0_24] : memref<1x128xf32, #tpu.memory_space<vmem>>, vector<1x128xf32>
    %33 = arith.truncf %23 : vector<16x128xf32> to vector<16x128xbf16>
    %cst_25 = arith.constant dense<0.000000e+00> : vector<16x128xf32>
    %34 = tpu.matmul %33, %31, %cst_25 {dimension_numbers = #tpu.dot_dimension_numbers<[1], [0], [0], [1], [0, 0, 1, 1], [], []>} : vector<16x128xbf16>, vector<128x128xbf16>, vector<16x128xf32> -> vector<16x128xf32>
    %35 = vector.broadcast %32 : vector<1x128xf32> to vector<16x128xf32>
    %36 = arith.addf %34, %35 : vector<16x128xf32>
    %cst_26 = arith.constant 0.000000e+00 : f32
    %37 = vector.broadcast %cst_26 : f32 to vector<16x128xf32>
    %38 = arith.maximumf %36, %37 : vector<16x128xf32>
    %39 = vector.shape_cast %38 : vector<16x128xf32> to vector<1x16x128xf32>
    %cst_27 = arith.constant dense<0.000000e+00> : vector<1xf32>
    %40 = vector.multi_reduction <add>, %39, %cst_27 [1, 2] : vector<1x16x128xf32> to vector<1xf32>
    %41 = vector.shape_cast %40 : vector<1xf32> to vector<1x1x1xf32>
    %42 = vector.extract %41[0, 0, 0] : f32 from vector<1x1x1xf32>
    %cst_28 = arith.constant 4.8828125E-4 : f32
    %43 = arith.mulf %42, %cst_28 : f32
    %c2 = arith.constant 2 : index
    %44 = memref.load %arg10[%c2] : memref<3xf32, #tpu.memory_space<smem>>
    memref.store %43, %arg10[%c2] : memref<3xf32, #tpu.memory_space<smem>>
    %c0_29 = arith.constant 0 : index
    %c0_30 = arith.constant 0 : index
    %45 = vector.load %arg9[%c0_29, %c0_30] : memref<16x128xf32, #tpu.memory_space<vmem>>, vector<16x128xf32>
    tpu.vector_store %arg9[%c0_29, %c0_30], %38 {strides = array<i32>} : memref<16x128xf32, #tpu.memory_space<vmem>>, vector<16x128xf32>,
    return
  }
}

</mosaic_0001>

<llo_original>
// kernel: fused_linear_relu_chain.1
$region0: #{fused_linear_relu_chain.1}
  #allocation0 [shape = 'u32[]', space=smem, size = 0x4, offset = 0x4, fixed_abs, tag = 'smem constant byte address 0x4 - core index']
  #allocation1 [shape = 'u32[144,128]{1,0:T(1,128)}', space=vmem, size = 0x12000, scoped, tag = 'internal scratch']
  %s0 = inlined_call_operand.hbm [shape: f32[16,128], index: 0, kind: input, shape index: {}]
  %s1 = inlined_call_operand.hbm [shape: bf16[128,128], index: 1, kind: input, shape index: {}]
  %s2 = inlined_call_operand.vmem [shape: f32[1,128], index: 2, kind: input, shape index: {}]
  %s3 = inlined_call_operand.hbm [shape: bf16[128,128], index: 3, kind: input, shape index: {}]
  %s4 = inlined_call_operand.vmem [shape: f32[1,128], index: 4, kind: input, shape index: {}]
  %s5 = inlined_call_operand.hbm [shape: bf16[128,128], index: 5, kind: input, shape index: {}]
  %s6 = inlined_call_operand.vmem [shape: f32[1,128], index: 6, kind: input, shape index: {}]
  %s7 = inlined_call_operand.hbm [shape: f32[16,128], index: 7, kind: output, shape index: {0}]
  %s8 = inlined_call_operand.hbm [shape: f32[16,128], index: 8, kind: output, shape index: {1}]
  %s9 = inlined_call_operand.hbm [shape: f32[16,128], index: 9, kind: output, shape index: {2}]
  %s10 = inlined_call_operand.hbm [shape: f32[3], index: 10, kind: output, shape index: {3}]
  %11 = xla_tuple %s7, %s8, %s9, %s10
  %s12 = sld [smem:[#allocation0]]
  $region78: #{fused_linear_relu_chain.1} parent=0
    _
  %s14 = ssub.s32 1, %s12
  %s15 = scalar_select 0, %s14, %s12
  $region1: #{fused_linear_relu_chain.1} parent=0
    #allocation2 [shape = 'u8[8192]{0}', space=vmem, size = 0x2000, scoped, tag = 'input window, operand 0, single buffered']
    #allocation3 [shape = 's32[1]{0}', space=sflag, size = 0x4, scoped, tag = 'scoped memory for fused_linear_relu_chain.1']
    #allocation4 [shape = 's32[1]{0}', space=sflag, size = 0x4, scoped, tag = 'scoped memory for fused_linear_relu_chain.1']
    #allocation5 [shape = 's32[1]{0}', space=sflag, size = 0x4, scoped, tag = 'scoped memory for fused_linear_relu_chain.1']
    #allocation6 [shape = 'u8[32768]{0}', space=vmem, size = 0x8000, scoped, tag = 'input window, operand 1, single buffered']
    #allocation7 [shape = 's32[1]{0}', space=sflag, size = 0x4, scoped, tag = 'scoped memory for fused_linear_relu_chain.1']
    #allocation8 [shape = 'u8[32768]{0}', space=vmem, size = 0x8000, scoped, tag = 'input window, operand 3, single buffered']
    #allocation9 [shape = 'u8[32768]{0}', space=vmem, size = 0x8000, scoped, tag = 'input window, operand 5, single buffered']
    #allocation10 [shape = 's32[1]{0}', space=sflag, size = 0x4, scoped, tag = 'scoped memory for fused_linear_relu_chain.1']
    #allocation11 [shape = 'u8[8192]{0}', space=vmem, size = 0x2000, scoped, tag = 'output window, operand 0, single buffered']
    #allocation12 [shape = 'u8[8192]{0}', space=vmem, size = 0x2000, scoped, tag = 'output window, operand 1, single buffered']
    #allocation13 [shape = 's32[1]{0}', space=sflag, size = 0x4, scoped, tag = 'scoped memory for fused_linear_relu_chain.1']
    #allocation14 [shape = 'u8[8192]{0}', space=vmem, size = 0x2000, scoped, tag = 'output window, operand 2, single buffered']
    #allocation15 [shape = 'u8[512]{0}', space=smem, size = 0x200, scoped, tag = 'output window, operand 3, single buffered']
    %16 = vsyncpa [#allocation3], 0
    %17 = vsyncpa [#allocation7], 0
    %18 = vsyncpa [#allocation10], 0
    %19 = vsyncpa [#allocation4], 0
    %20 = vsyncpa [#allocation13], 0
    %21 = vsyncpa [#allocation5], 0
    // Predicated region
    $region2: #{fused_linear_relu_chain.1} parent=1 // pred_check
      _
    $region3: #{fused_linear_relu_chain.1} parent=1 // pred_check_branch
      %23 = sbr.rel (0) target = $region5
    $region4: #{fused_linear_relu_chain.1} parent=1 // pred_region
      %s25 = ssub.s32 256, 256
      %26 = vsyncadd [#allocation3], %s25
      %s27 = sshll.u32 [#allocation2], 4
      %s28 = int_to_ptr.vmem [resolvable:$true] %s27
      %33 = dma.hbm_to_vmem [thread:$0]  %s0, 256, %s28, [#allocation3], 128, 128, 8
    $region5: #{fused_linear_relu_chain.1} parent=1 // pred_fallthru
      _
    // Predicated region
    $region6: #{fused_linear_relu_chain.1} parent=1 // pred_check
      _
    $region7: #{fused_linear_relu_chain.1} parent=1 // pred_check_branch
      %35 = sbr.rel (0) target = $region9
    $region8: #{fused_linear_relu_chain.1} parent=1 // pred_region
      %s37 = ssub.s32 1024, 1024
      %38 = vsyncadd [#allocation7], %s37
      %s39 = sshll.u32 [#allocation6], 4
      %s40 = int_to_ptr.vmem [resolvable:$true] %s39
      %45 = dma.hbm_to_vmem [thread:$0]  %s1, 1024, %s40, [#allocation7], 64, 64, 4
    $region9: #{fused_linear_relu_chain.1} parent=1 // pred_fallthru
      _
    // Predicated region
    $region10: #{fused_linear_relu_chain.1} parent=1 // pred_check
      _
    $region11: #{fused_linear_relu_chain.1} parent=1 // pred_check_branch
      %47 = sbr.rel (0) target = $region13
    $region12: #{fused_linear_relu_chain.1} parent=1 // pred_region
      _
    $region13: #{fused_linear_relu_chain.1} parent=1 // pred_fallthru
      _
    // Predicated region
    $region14: #{fused_linear_relu_chain.1} parent=1 // pred_check
      _
    $region15: #{fused_linear_relu_chain.1} parent=1 // pred_check_branch
      %49 = sbr.rel (0) target = $region17
    $region16: #{fused_linear_relu_chain.1} parent=1 // pred_region
      %s51 = ssub.s32 1024, 1024
      %52 = vsyncadd [#allocation7], %s51
      %s53 = sshll.u32 [#allocation8], 4
      %s54 = int_to_ptr.vmem [resolvable:$true] %s53
      %59 = dma.hbm_to_vmem [thread:$0]  %s3, 1024, %s54, [#allocation7], 64, 64, 4
    $region17: #{fused_linear_relu_chain.1} parent=1 // pred_fallthru
      _
    // Predicated region
    $region18: #{fused_linear_relu_chain.1} parent=1 // pred_check
      _
    $region19: #{fused_linear_relu_chain.1} parent=1 // pred_check_branch
      %61 = sbr.rel (0) target = $region21
    $region20: #{fused_linear_relu_chain.1} parent=1 // pred_region
      _
    $region21: #{fused_linear_relu_chain.1} parent=1 // pred_fallthru
      _
    // Predicated region
    $region22: #{fused_linear_relu_chain.1} parent=1 // pred_check
      _
    $region23: #{fused_linear_relu_chain.1} parent=1 // pred_check_branch
      %63 = sbr.rel (0) target = $region25
    $region24: #{fused_linear_relu_chain.1} parent=1 // pred_region
      %s65 = ssub.s32 1024, 1024
      %66 = vsyncadd [#allocation10], %s65
      %s67 = sshll.u32 [#allocation9], 4
      %s68 = int_to_ptr.vmem [resolvable:$true] %s67
      %73 = dma.hbm_to_vmem [thread:$0]  %s5, 1024, %s68, [#allocation10], 64, 64, 4
    $region25: #{fused_linear_relu_chain.1} parent=1 // pred_fallthru
      _
    // Predicated region
    $region26: #{fused_linear_relu_chain.1} parent=1 // pred_check
      _
    $region27: #{fused_linear_relu_chain.1} parent=1 // pred_check_branch
      %75 = sbr.rel (0) target = $region29
    $region28: #{fused_linear_relu_chain.1} parent=1 // pred_region
      _
    $region29: #{fused_linear_relu_chain.1} parent=1 // pred_fallthru
      _
    // Predicated region
    $region30: #{fused_linear_relu_chain.1} parent=1 // pred_check
      _
    $region31: #{fused_linear_relu_chain.1} parent=1 // pred_check_branch
      %77 = sbr.rel (0) target = $region33
    $region32: #{fused_linear_relu_chain.1} parent=1 // pred_region
      %78 = dma.done [#allocation3], 256
    $region33: #{fused_linear_relu_chain.1} parent=1 // pred_fallthru
      _
    // Predicated region
    $region34: #{fused_linear_relu_chain.1} parent=1 // pred_check
      _
    $region35: #{fused_linear_relu_chain.1} parent=1 // pred_check_branch
      %80 = sbr.rel (0) target = $region37
    $region36: #{fused_linear_relu_chain.1} parent=1 // pred_region
      %81 = dma.done [#allocation7], 1024
    $region37: #{fused_linear_relu_chain.1} parent=1 // pred_fallthru
      _
    // Predicated region
    $region38: #{fused_linear_relu_chain.1} parent=1 // pred_check
      _
    $region39: #{fused_linear_relu_chain.1} parent=1 // pred_check_branch
      %83 = sbr.rel (0) target = $region41
    $region40: #{fused_linear_relu_chain.1} parent=1 // pred_region
      %84 = dma.done [#allocation7], 1024
    $region41: #{fused_linear_relu_chain.1} parent=1 // pred_fallthru
      _
    // Predicated region
    $region42: #{fused_linear_relu_chain.1} parent=1 // pred_check
      _
    $region43: #{fused_linear_relu_chain.1} parent=1 // pred_check_branch
      %86 = sbr.rel (0) target = $region45
    $region44: #{fused_linear_relu_chain.1} parent=1 // pred_region
      %87 = dma.done [#allocation10], 1024
    $region45: #{fused_linear_relu_chain.1} parent=1 // pred_fallthru
      _
    %v89 = vld [vmem:[#allocation2] sm:$0xff]
    %v90 = vld [vmem:[#allocation2 + $0x8] sm:$0xff]
    %v91 = vld [vmem:[#allocation6] sm:$0xf]
    %v92 = vld [vmem:[#allocation6 + $0x4] sm:$0xf]
    %v93 = vld [vmem:[#allocation6 + $0x8] sm:$0xf]
    %v94 = vld [vmem:[#allocation6 + $0xc] sm:$0xf]
    %v95 = vld [vmem:[#allocation6 + $0x10] sm:$0xf]
    %v96 = vld [vmem:[#allocation6 + $0x14] sm:$0xf]
    %v97 = vld [vmem:[#allocation6 + $0x18] sm:$0xf]
    %v98 = vld [vmem:[#allocation6 + $0x1c] sm:$0xf]
    %v99 = vld [vmem:[#allocation6 + $0x20] sm:$0xf]
    %v100 = vld [vmem:[#allocation6 + $0x24] sm:$0xf]
    %v101 = vld [vmem:[#allocation6 + $0x28] sm:$0xf]
    %v102 = vld [vmem:[#allocation6 + $0x2c] sm:$0xf]
    %v103 = vld [vmem:[#allocation6 + $0x30] sm:$0xf]
    %v104 = vld [vmem:[#allocation6 + $0x34] sm:$0xf]
    %v105 = vld [vmem:[#allocation6 + $0x38] sm:$0xf]
    %v106 = vld [vmem:[#allocation6 + $0x3c] sm:$0xf]
    %v107 = vld [vmem:[%s2] sm:$0x1]
    %v108 = vpack.c.bf16 %v90, %v89
    %v110 = vlaneseq
    %v111 = vshrl.u32 %v110, 7
    %v112 = vsub.s32 0, %v111
    %v113 = vrot.slane %v107, %v112
    %v131 = vunpack.c.l.b16 %v91
    %v132 = vunpack.c.l.b16 %v92
    %v133 = vunpack.c.l.b16 %v93
    %v134 = vunpack.c.l.b16 %v94
    %v135 = vunpack.c.l.b16 %v95
    %v136 = vunpack.c.l.b16 %v96
    %v137 = vunpack.c.l.b16 %v97
    %v138 = vunpack.c.l.b16 %v98
    %v139 = vunpack.c.l.b16 %v99
    %v140 = vunpack.c.l.b16 %v100
    %v141 = vunpack.c.l.b16 %v101
    %v142 = vunpack.c.l.b16 %v102
    %v143 = vunpack.c.l.b16 %v103
    %v144 = vunpack.c.l.b16 %v104
    %v145 = vunpack.c.l.b16 %v105
    %v146 = vunpack.c.l.b16 %v106
    %v147 = vpack.c.b16 %v132, %v131
    %v148 = vpack.c.b16 %v134, %v133
    %v149 = vpack.c.b16 %v136, %v135
    %v150 = vpack.c.b16 %v138, %v137
    %v151 = vpack.c.b16 %v140, %v139
    %v152 = vpack.c.b16 %v142, %v141
    %v153 = vpack.c.b16 %v144, %v143
    %v154 = vpack.c.b16 %v146, %v145
    %163 = vmatprep.subr.bf16.mxu0 0
    %164 = vmatpush1.bf16.msra.mxu0 %v147
    %165 = vmatprep.subr.bf16.mxu0 0
    %166 = vmatpush1.bf16.msra.mxu0 %v148
    %167 = vmatprep.subr.bf16.mxu0 0
    %168 = vmatpush1.bf16.msra.mxu0 %v149
    %169 = vmatprep.subr.bf16.mxu0 0
    %170 = vmatpush1.bf16.msra.mxu0 %v150
    %171 = vmatprep.subr.bf16.mxu0 0
    %172 = vmatpush1.bf16.msra.mxu0 %v151
    %173 = vmatprep.subr.bf16.mxu0 0
    %174 = vmatpush1.bf16.msra.mxu0 %v152
    %175 = vmatprep.subr.bf16.mxu0 0
    %176 = vmatpush1.bf16.msra.mxu0 %v153
    %177 = vmatprep.subr.bf16.mxu0 0
    %178 = vmatpush1.bf16.msra.mxu0 %v154
    %179 = vmatprep.subr.bf16.mxu0 0
    %180 = vmatpush1.bf16.msra.mxu0 0
    %181 = vmatprep.subr.bf16.mxu0 0
    %182 = vmatpush1.bf16.msra.mxu0 0
    %183 = vmatprep.subr.bf16.mxu0 0
    %184 = vmatpush1.bf16.msra.mxu0 0
    %185 = vmatprep.subr.bf16.mxu0 0
    %186 = vmatpush1.bf16.msra.mxu0 0
    %187 = vmatprep.subr.bf16.mxu0 0
    %188 = vmatpush1.bf16.msra.mxu0 0
    %189 = vmatprep.subr.bf16.mxu0 0
    %190 = vmatpush1.bf16.msra.mxu0 0
    %191 = vmatprep.subr.bf16.mxu0 0
    %192 = vmatpush1.bf16.msra.mxu0 0
    %193 = vmatprep.subr.bf16.mxu0 0
    %194 = vmatpush1.bf16.msra.mxu0 0
    %195 = vmatprep.mubr.bf16.mxu0 0
    %196 = vmatmul.mubr.bf16.gmra.mrb[0].mxu0 %v108
    %v197 = vpop.f32.mrb[0].mxu0
    %v198 = vadd.f32 %v113, %v197
    %v199 = vpop.f32.mrb[0].mxu0
    %v200 = vpop.f32.mrb[0].mxu0
    %v201 = vadd.f32 %v113, %v200
    %v202 = vpop.f32.mrb[0].mxu0
    %203 = vdwg.mxu0
    %v204 = vmax.f32 %v198, 0.0
    %v205 = vmax.f32 %v201, 0.0
    %v206 = vadd.f32 %v204, %v205
    %207 = vadd.xlane.f32.xlu0 %v206
    %v208 = vpop.xlane.xlu0 %207
    %v209 = vrot.slane %v208, 4
    %v210 = vadd.f32 %v208, %v209
    %v211 = vrot.slane %v210, 2
    %v212 = vadd.f32 %v210, %v211
    %v213 = vrot.slane %v212, 1
    %v214 = vadd.f32 %v212, %v213
    %s215 = vtos %v214
    %s216 = smul.f32 %s215, 0.00048828125
    %s217 = scalar_lea.smem [#allocation15], 0
    %218 = sst [smem:[%s217]] %s216
    %219 = vst [vmem:[#allocation11] sm:$0xff] %v204
    %220 = vst [vmem:[#allocation11 + $0x8] sm:$0xff] %v205
    %v221 = vld [vmem:[#allocation8] sm:$0xf]
    %v222 = vld [vmem:[#allocation8 + $0x4] sm:$0xf]
    %v223 = vld [vmem:[#allocation8 + $0x8] sm:$0xf]
    %v224 = vld [vmem:[#allocation8 + $0xc] sm:$0xf]
    %v225 = vld [vmem:[#allocation8 + $0x10] sm:$0xf]
    %v226 = vld [vmem:[#allocation8 + $0x14] sm:$0xf]
    %v227 = vld [vmem:[#allocation8 + $0x18] sm:$0xf]
    %v228 = vld [vmem:[#allocation8 + $0x1c] sm:$0xf]
    %v229 = vld [vmem:[#allocation8 + $0x20] sm:$0xf]
    %v230 = vld [vmem:[#allocation8 + $0x24] sm:$0xf]
    %v231 = vld [vmem:[#allocation8 + $0x28] sm:$0xf]
    %v232 = vld [vmem:[#allocation8 + $0x2c] sm:$0xf]
    %v233 = vld [vmem:[#allocation8 + $0x30] sm:$0xf]
    %v234 = vld [vmem:[#allocation8 + $0x34] sm:$0xf]
    %v235 = vld [vmem:[#allocation8 + $0x38] sm:$0xf]
    %v236 = vld [vmem:[#allocation8 + $0x3c] sm:$0xf]
    %v237 = vld [vmem:[%s4] sm:$0x1]
    %v238 = vpack.c.bf16 %v205, %v204
    %v240 = vlaneseq
    %v241 = vshrl.u32 %v240, 7
    %v242 = vsub.s32 0, %v241
    %v243 = vrot.slane %v237, %v242
    %v261 = vunpack.c.l.b16 %v221
    %v262 = vunpack.c.l.b16 %v222
    %v263 = vunpack.c.l.b16 %v223
    %v264 = vunpack.c.l.b16 %v224
    %v265 = vunpack.c.l.b16 %v225
    %v266 = vunpack.c.l.b16 %v226
    %v267 = vunpack.c.l.b16 %v227
    %v268 = vunpack.c.l.b16 %v228
    %v269 = vunpack.c.l.b16 %v229
    %v270 = vunpack.c.l.b16 %v230
    %v271 = vunpack.c.l.b16 %v231
    %v272 = vunpack.c.l.b16 %v232
    %v273 = vunpack.c.l.b16 %v233
    %v274 = vunpack.c.l.b16 %v234
    %v275 = vunpack.c.l.b16 %v235
    %v276 = vunpack.c.l.b16 %v236
    %v277 = vpack.c.b16 %v262, %v261
    %v278 = vpack.c.b16 %v264, %v263
    %v279 = vpack.c.b16 %v266, %v265
    %v280 = vpack.c.b16 %v268, %v267
    %v281 = vpack.c.b16 %v270, %v269
    %v282 = vpack.c.b16 %v272, %v271
    %v283 = vpack.c.b16 %v274, %v273
    %v284 = vpack.c.b16 %v276, %v275
    %293 = vmatprep.subr.bf16.mxu0 0
    %294 = vmatpush1.bf16.msra.mxu0 %v277
    %295 = vmatprep.subr.bf16.mxu0 0
    %296 = vmatpush1.bf16.msra.mxu0 %v278
    %297 = vmatprep.subr.bf16.mxu0 0
    %298 = vmatpush1.bf16.msra.mxu0 %v279
    %299 = vmatprep.subr.bf16.mxu0 0
    %300 = vmatpush1.bf16.msra.mxu0 %v280
    %301 = vmatprep.subr.bf16.mxu0 0
    %302 = vmatpush1.bf16.msra.mxu0 %v281
    %303 = vmatprep.subr.bf16.mxu0 0
    %304 = vmatpush1.bf16.msra.mxu0 %v282
    %305 = vmatprep.subr.bf16.mxu0 0
    %306 = vmatpush1.bf16.msra.mxu0 %v283
    %307 = vmatprep.subr.bf16.mxu0 0
    %308 = vmatpush1.bf16.msra.mxu0 %v284
    %309 = vmatprep.subr.bf16.mxu0 0
    %310 = vmatpush1.bf16.msra.mxu0 0
    %311 = vmatprep.subr.bf16.mxu0 0
    %312 = vmatpush1.bf16.msra.mxu0 0
    %313 = vmatprep.subr.bf16.mxu0 0
    %314 = vmatpush1.bf16.msra.mxu0 0
    %315 = vmatprep.subr.bf16.mxu0 0
    %316 = vmatpush1.bf16.msra.mxu0 0
    %317 = vmatprep.subr.bf16.mxu0 0
    %318 = vmatpush1.bf16.msra.mxu0 0
    %319 = vmatprep.subr.bf16.mxu0 0
    %320 = vmatpush1.bf16.msra.mxu0 0
    %321 = vmatprep.subr.bf16.mxu0 0
    %322 = vmatpush1.bf16.msra.mxu0 0
    %323 = vmatprep.subr.bf16.mxu0 0
    %324 = vmatpush1.bf16.msra.mxu0 0
    %325 = vmatprep.mubr.bf16.mxu0 0
    %326 = vmatmul.mubr.bf16.gmra.mrb[0].mxu0 %v238
    %v327 = vpop.f32.mrb[0].mxu0
    %v328 = vadd.f32 %v243, %v327
    %v329 = vpop.f32.mrb[0].mxu0
    %v330 = vpop.f32.mrb[0].mxu0
    %v331 = vadd.f32 %v243, %v330
    %v332 = vpop.f32.mrb[0].mxu0
    %333 = vdwg.mxu0
    %v334 = vmax.f32 %v328, 0.0
    %v335 = vmax.f32 %v331, 0.0
    %v336 = vadd.f32 %v334, %v335
    %337 = vadd.xlane.f32.xlu0 %v336
    %v338 = vpop.xlane.xlu0 %337
    %v339 = vrot.slane %v338, 4
    %v340 = vadd.f32 %v338, %v339
    %v341 = vrot.slane %v340, 2
    %v342 = vadd.f32 %v340, %v341
    %v343 = vrot.slane %v342, 1
    %v344 = vadd.f32 %v342, %v343
    %s345 = vtos %v344
    %s346 = smul.f32 %s345, 0.00048828125
    %s347 = scalar_lea.smem [#allocation15], 1
    %348 = sst [smem:[%s347]] %s346
    %349 = vst [vmem:[#allocation12] sm:$0xff] %v334
    %350 = vst [vmem:[#allocation12 + $0x8] sm:$0xff] %v335
    %v351 = vld [vmem:[#allocation9] sm:$0xf]
    %v352 = vld [vmem:[#allocation9 + $0x4] sm:$0xf]
    %v353 = vld [vmem:[#allocation9 + $0x8] sm:$0xf]
    %v354 = vld [vmem:[#allocation9 + $0xc] sm:$0xf]
    %v355 = vld [vmem:[#allocation9 + $0x10] sm:$0xf]
    %v356 = vld [vmem:[#allocation9 + $0x14] sm:$0xf]
    %v357 = vld [vmem:[#allocation9 + $0x18] sm:$0xf]
    %v358 = vld [vmem:[#allocation9 + $0x1c] sm:$0xf]
    %v359 = vld [vmem:[#allocation9 + $0x20] sm:$0xf]
    %v360 = vld [vmem:[#allocation9 + $0x24] sm:$0xf]
    %v361 = vld [vmem:[#allocation9 + $0x28] sm:$0xf]
    %v362 = vld [vmem:[#allocation9 + $0x2c] sm:$0xf]
    %v363 = vld [vmem:[#allocation9 + $0x30] sm:$0xf]
    %v364 = vld [vmem:[#allocation9 + $0x34] sm:$0xf]
    %v365 = vld [vmem:[#allocation9 + $0x38] sm:$0xf]
    %v366 = vld [vmem:[#allocation9 + $0x3c] sm:$0xf]
    %v367 = vld [vmem:[%s6] sm:$0x1]
    %v368 = vpack.c.bf16 %v335, %v334
    %v370 = vlaneseq
    %v371 = vshrl.u32 %v370, 7
    %v372 = vsub.s32 0, %v371
    %v373 = vrot.slane %v367, %v372
    %v391 = vunpack.c.l.b16 %v351
    %v392 = vunpack.c.l.b16 %v352
    %v393 = vunpack.c.l.b16 %v353
    %v394 = vunpack.c.l.b16 %v354
    %v395 = vunpack.c.l.b16 %v355
    %v396 = vunpack.c.l.b16 %v356
    %v397 = vunpack.c.l.b16 %v357
    %v398 = vunpack.c.l.b16 %v358
    %v399 = vunpack.c.l.b16 %v359
    %v400 = vunpack.c.l.b16 %v360
    %v401 = vunpack.c.l.b16 %v361
    %v402 = vunpack.c.l.b16 %v362
    %v403 = vunpack.c.l.b16 %v363
    %v404 = vunpack.c.l.b16 %v364
    %v405 = vunpack.c.l.b16 %v365
    %v406 = vunpack.c.l.b16 %v366
    %v407 = vpack.c.b16 %v392, %v391
    %v408 = vpack.c.b16 %v394, %v393
    %v409 = vpack.c.b16 %v396, %v395
    %v410 = vpack.c.b16 %v398, %v397
    %v411 = vpack.c.b16 %v400, %v399
    %v412 = vpack.c.b16 %v402, %v401
    %v413 = vpack.c.b16 %v404, %v403
    %v414 = vpack.c.b16 %v406, %v405
    %423 = vmatprep.subr.bf16.mxu0 0
    %424 = vmatpush1.bf16.msra.mxu0 %v407
    %425 = vmatprep.subr.bf16.mxu0 0
    %426 = vmatpush1.bf16.msra.mxu0 %v408
    %427 = vmatprep.subr.bf16.mxu0 0
    %428 = vmatpush1.bf16.msra.mxu0 %v409
    %429 = vmatprep.subr.bf16.mxu0 0
    %430 = vmatpush1.bf16.msra.mxu0 %v410
    %431 = vmatprep.subr.bf16.mxu0 0
    %432 = vmatpush1.bf16.msra.mxu0 %v411
    %433 = vmatprep.subr.bf16.mxu0 0
    %434 = vmatpush1.bf16.msra.mxu0 %v412
    %435 = vmatprep.subr.bf16.mxu0 0
    %436 = vmatpush1.bf16.msra.mxu0 %v413
    %437 = vmatprep.subr.bf16.mxu0 0
    %438 = vmatpush1.bf16.msra.mxu0 %v414
    %439 = vmatprep.subr.bf16.mxu0 0
    %440 = vmatpush1.bf16.msra.mxu0 0
    %441 = vmatprep.subr.bf16.mxu0 0
    %442 = vmatpush1.bf16.msra.mxu0 0
    %443 = vmatprep.subr.bf16.mxu0 0
    %444 = vmatpush1.bf16.msra.mxu0 0
    %445 = vmatprep.subr.bf16.mxu0 0
    %446 = vmatpush1.bf16.msra.mxu0 0
    %447 = vmatprep.subr.bf16.mxu0 0
    %448 = vmatpush1.bf16.msra.mxu0 0
    %449 = vmatprep.subr.bf16.mxu0 0
    %450 = vmatpush1.bf16.msra.mxu0 0
    %451 = vmatprep.subr.bf16.mxu0 0
    %452 = vmatpush1.bf16.msra.mxu0 0
    %453 = vmatprep.subr.bf16.mxu0 0
    %454 = vmatpush1.bf16.msra.mxu0 0
    %455 = vmatprep.mubr.bf16.mxu0 0
    %456 = vmatmul.mubr.bf16.gmra.mrb[0].mxu0 %v368
    %v457 = vpop.f32.mrb[0].mxu0
    %v458 = vadd.f32 %v373, %v457
    %v459 = vpop.f32.mrb[0].mxu0
    %v460 = vpop.f32.mrb[0].mxu0
    %v461 = vadd.f32 %v373, %v460
    %v462 = vpop.f32.mrb[0].mxu0
    %463 = vdwg.mxu0
    %v464 = vmax.f32 %v458, 0.0
    %v465 = vmax.f32 %v461, 0.0
    %v466 = vadd.f32 %v464, %v465
    %467 = vadd.xlane.f32.xlu0 %v466
    %v468 = vpop.xlane.xlu0 %467
    %v469 = vrot.slane %v468, 4
    %v470 = vadd.f32 %v468, %v469
    %v471 = vrot.slane %v470, 2
    %v472 = vadd.f32 %v470, %v471
    %v473 = vrot.slane %v472, 1
    %v474 = vadd.f32 %v472, %v473
    %s475 = vtos %v474
    %s476 = smul.f32 %s475, 0.00048828125
    %s477 = scalar_lea.smem [#allocation15], 2
    %478 = sst [smem:[%s477]] %s476
    %479 = vst [vmem:[#allocation14] sm:$0xff] %v464
    %480 = vst [vmem:[#allocation14 + $0x8] sm:$0xff] %v465
    // Predicated region
    $region46: #{fused_linear_relu_chain.1} parent=1 // pred_check
      _
    $region47: #{fused_linear_relu_chain.1} parent=1 // pred_check_branch
      %482 = sbr.rel (0) target = $region49
    $region48: #{fused_linear_relu_chain.1} parent=1 // pred_region
      %s484 = ssub.s32 256, 256
      %485 = vsyncadd [#allocation4], %s484
      %s486 = sshll.u32 [#allocation11], 4
      %s487 = int_to_ptr.vmem [resolvable:$true] %s486
      %492 = dma.vmem_to_hbm [thread:$0]  %s487, 256, %s7, [#allocation4], 128, 128, 8
    $region49: #{fused_linear_relu_chain.1} parent=1 // pred_fallthru
      _
    // Predicated region
    $region50: #{fused_linear_relu_chain.1} parent=1 // pred_check
      _
    $region51: #{fused_linear_relu_chain.1} parent=1 // pred_check_branch
      %494 = sbr.rel (0) target = $region53
    $region52: #{fused_linear_relu_chain.1} parent=1 // pred_region
      %s496 = ssub.s32 256, 256
      %497 = vsyncadd [#allocation13], %s496
      %s498 = sshll.u32 [#allocation12], 4
      %s499 = int_to_ptr.vmem [resolvable:$true] %s498
      %504 = dma.vmem_to_hbm [thread:$0]  %s499, 256, %s8, [#allocation13], 128, 128, 8
    $region53: #{fused_linear_relu_chain.1} parent=1 // pred_fallthru
      _
    // Predicated region
    $region54: #{fused_linear_relu_chain.1} parent=1 // pred_check
      _
    $region55: #{fused_linear_relu_chain.1} parent=1 // pred_check_branch
      %506 = sbr.rel (0) target = $region57
    $region56: #{fused_linear_relu_chain.1} parent=1 // pred_region
      %s508 = ssub.s32 256, 256
      %509 = vsyncadd [#allocation13], %s508
      %s510 = sshll.u32 [#allocation14], 4
      %s511 = int_to_ptr.vmem [resolvable:$true] %s510
      %516 = dma.vmem_to_hbm [thread:$0]  %s511, 256, %s9, [#allocation13], 128, 128, 8
    $region57: #{fused_linear_relu_chain.1} parent=1 // pred_fallthru
      _
    // Predicated region
    $region58: #{fused_linear_relu_chain.1} parent=1 // pred_check
      _
    $region59: #{fused_linear_relu_chain.1} parent=1 // pred_check_branch
      %518 = sbr.rel (0) target = $region61
    $region60: #{fused_linear_relu_chain.1} parent=1 // pred_region
      %s520 = ssub.s32 16, 16
      %521 = vsyncadd [#allocation5], %s520
      %524 = dma.smem_to_hbm [#allocation15], 16, %s10, [#allocation5]
    $region61: #{fused_linear_relu_chain.1} parent=1 // pred_fallthru
      _
    // Predicated region
    $region62: #{fused_linear_relu_chain.1} parent=1 // pred_check
      _
    $region63: #{fused_linear_relu_chain.1} parent=1 // pred_check_branch
      %526 = sbr.rel (0) target = $region65
    $region64: #{fused_linear_relu_chain.1} parent=1 // pred_region
      %527 = dma.done [#allocation4], 256
    $region65: #{fused_linear_relu_chain.1} parent=1 // pred_fallthru
      _
    // Predicated region
    $region66: #{fused_linear_relu_chain.1} parent=1 // pred_check
      _
    $region67: #{fused_linear_relu_chain.1} parent=1 // pred_check_branch
      %529 = sbr.rel (0) target = $region69
    $region68: #{fused_linear_relu_chain.1} parent=1 // pred_region
      %530 = dma.done [#allocation13], 256
    $region69: #{fused_linear_relu_chain.1} parent=1 // pred_fallthru
      _
    // Predicated region
    $region70: #{fused_linear_relu_chain.1} parent=1 // pred_check
      _
    $region71: #{fused_linear_relu_chain.1} parent=1 // pred_check_branch
      %532 = sbr.rel (0) target = $region73
    $region72: #{fused_linear_relu_chain.1} parent=1 // pred_region
      %533 = dma.done [#allocation13], 256
    $region73: #{fused_linear_relu_chain.1} parent=1 // pred_fallthru
      _
    // Predicated region
    $region74: #{fused_linear_relu_chain.1} parent=1 // pred_check
      _
    $region75: #{fused_linear_relu_chain.1} parent=1 // pred_check_branch
      %535 = sbr.rel (0) target = $region77
    $region76: #{fused_linear_relu_chain.1} parent=1 // pred_region
      %536 = dma.done [#allocation5], 16
    $region77: #{fused_linear_relu_chain.1} parent=1 // pred_fallthru
      _
    %537 = sfence
    %538 = vsyncpa [#allocation3], 1
    %539 = vsyncpa [#allocation7], 1
    %540 = vsyncpa [#allocation10], 1
    %541 = vsyncpa [#allocation4], 1
    %542 = vsyncpa [#allocation13], 1
    %543 = vsyncpa [#allocation5], 1

</llo_original>
